<compile_context>
chip_gen: v7x
topology: tpu7x:2x2x1
jax: 0.10.0
libtpu: 0.0.40
codegen_flags: <defaults>
</compile_context>

<pallas_src>
import functools
import math

import jax
import jax.numpy as jnp
from jax.experimental import pallas as pl
from jax.experimental.pallas import tpu as pltpu


_NEG_INF = -1e9
_VMEM_LIMIT = 48 * 1024 * 1024  # explicit scoped-VMEM budget (safe on v5e/v6e/v7x)


def _tile(dim, target):
    """Largest tile <= target that evenly divides dim (full dim if small)."""
    if dim <= target:
        return dim
    t = target
    while dim % t:
        t //= 2
    return max(t, 1)


# ----------------------------- Pallas kernels ------------------------------ #

def _ln_linear_kernel(x_ref, g_ref, bln_ref, w_ref, b_ref, o_ref, *, activation):
    """Fused LayerNorm (f32) + matmul (bf16 MXU, f32 acc) + optional GELU."""
    x = x_ref[...].astype(jnp.float32)                         # (tm, K), K = full D
    mu = jnp.mean(x, axis=-1, keepdims=True)
    var = jnp.mean((x - mu) * (x - mu), axis=-1, keepdims=True)
    xn = (x - mu) * jax.lax.rsqrt(var + 1e-5)
    xn = xn * g_ref[...].astype(jnp.float32) + bln_ref[...].astype(jnp.float32)
    y = jnp.dot(xn.astype(w_ref.dtype), w_ref[...],
                preferred_element_type=jnp.float32)
    y = y + b_ref[...].astype(jnp.float32)
    if activation == "gelu":
        # tanh-approx GELU, f32 epilogue (VPU/EUP work hides under the MXU).
        y = 0.5 * y * (1.0 + jnp.tanh(
            0.7978845608028654 * (y + 0.044715 * y * y * y)))
    o_ref[...] = y.astype(o_ref.dtype)


def _linear_residual_kernel(x_ref, w_ref, b_ref, r_ref, o_ref, acc_ref):
    """K-tiled matmul with f32 accumulator; bias + residual fused in epilogue."""
    @pl.when(pl.program_id(2) == 0)
    def _():
        acc_ref[...] = jnp.zeros_like(acc_ref)

    acc_ref[...] += jnp.dot(x_ref[...], w_ref[...],
                            preferred_element_type=jnp.float32)

    @pl.when(pl.program_id(2) == pl.num_programs(2) - 1)
    def _():
        y = (acc_ref[...] + b_ref[...].astype(jnp.float32)
             + r_ref[...].astype(jnp.float32))
        o_ref[...] = y.astype(o_ref.dtype)


def _lm_head_kernel(x_ref, g_ref, b_ref, wte_ref, o_ref):
    """Fused final LayerNorm + tied LM head; contracts D against wte's D (no .T)."""
    x = x_ref[...].astype(jnp.float32)
    mu = jnp.mean(x, axis=-1, keepdims=True)
    var = jnp.mean((x - mu) * (x - mu), axis=-1, keepdims=True)
    xn = (x - mu) * jax.lax.rsqrt(var + 1e-5)
    xn = xn * g_ref[...].astype(jnp.float32) + b_ref[...].astype(jnp.float32)
    logits = jax.lax.dot_general(
        xn.astype(wte_ref.dtype), wte_ref[...],
        dimension_numbers=(((1,), (1,)), ((), ())),            # x[:,D] . wte[:,D]^T
        preferred_element_type=jnp.float32)
    o_ref[...] = logits.astype(o_ref.dtype)


def _flash_attn_kernel(q_ref, k_ref, v_ref, mask_ref, o_ref,
                       m_sc, l_sc, acc_sc, *, scale):
    """Flash-style causal attention for one (batch, head, q-tile); kv axis is last."""
    tq, _ = q_ref.shape
    tkv = k_ref.shape[0]
    qi = pl.program_id(2)
    ki = pl.program_id(3)

    @pl.when(ki == 0)
    def _():
        m_sc[...] = jnp.full_like(m_sc, -jnp.inf)
        l_sc[...] = jnp.zeros_like(l_sc)
        acc_sc[...] = jnp.zeros_like(acc_sc)

    # Causal block sparsity: KV tiles entirely above the diagonal contribute
    # exp(-inf)=0 weight -> skip their MXU/VPU work entirely.  The ki==0 tile is
    # never skipped, so init/flush phases stay intact.
    @pl.when(ki * tkv <= qi * tq + tq - 1)
    def _():
        # Fold the softmax scale into Q once (tq*Dh muls) instead of into the
        # (tq, tkv) score matrix on every KV step.
        q = (q_ref[...].astype(jnp.float32) * scale).astype(q_ref.dtype)
        s = jax.lax.dot_general(q, k_ref[...],
                                (((1,), (1,)), ((), ())),
                                preferred_element_type=jnp.float32)  # (tq, tkv)
        row = qi * tq + jax.lax.broadcasted_iota(jnp.int32, (tq, tkv), 0)
        col = ki * tkv + jax.lax.broadcasted_iota(jnp.int32, (tq, tkv), 1)
        s = s + jnp.where(col <= row, 0.0, _NEG_INF)           # causal mask
        s = s + mask_ref[...].astype(jnp.float32)              # key-padding bias (1, tkv)

        m_prev = m_sc[...]
        m_new = jnp.maximum(m_prev, jnp.max(s, axis=-1, keepdims=True))
        alpha = jnp.exp(m_prev - m_new)
        p = jnp.exp(s - m_new)
        l_sc[...] = alpha * l_sc[...] + jnp.sum(p, axis=-1, keepdims=True)
        acc_sc[...] = alpha * acc_sc[...] + jnp.dot(
            p.astype(v_ref.dtype), v_ref[...], preferred_element_type=jnp.float32)
        m_sc[...] = m_new

    @pl.when(ki == pl.num_programs(3) - 1)
    def _():
        o_ref[...] = (acc_sc[...] *
                      pl.reciprocal(l_sc[...], approx=True)).astype(o_ref.dtype)


# ------------------------------ Pallas wrappers ----------------------------- #

def pallas_fused_ln_linear(x, ln_g, ln_b, w, bias, activation=None):
    M, K = x.shape
    N = w.shape[1]
    tm, tn = _tile(M, 256), _tile(N, 256)
    kernel = functools.partial(_ln_linear_kernel, activation=activation)
    cost = pl.CostEstimate(
        flops=2 * M * N * K,
        transcendentals=M * N if activation == "gelu" else 0,
        bytes_accessed=2 * (M * K + K * N + M * N))
    return pl.pallas_call(
        kernel,
        out_shape=jax.ShapeDtypeStruct((M, N), x.dtype),
        grid=(M // tm, N // tn),
        in_specs=[
            pl.BlockSpec((tm, K), lambda i, j: (i, 0)),
            pl.BlockSpec((1, K), lambda i, j: (0, 0)),
            pl.BlockSpec((1, K), lambda i, j: (0, 0)),
            pl.BlockSpec((K, tn), lambda i, j: (0, j)),
            pl.BlockSpec((1, tn), lambda i, j: (0, j)),
        ],
        out_specs=pl.BlockSpec((tm, tn), lambda i, j: (i, j)),
        compiler_params=pltpu.CompilerParams(
            dimension_semantics=("parallel", "parallel"),
            vmem_limit_bytes=_VMEM_LIMIT),
        cost_estimate=cost,
    )(x, ln_g.reshape(1, K), ln_b.reshape(1, K), w, bias.reshape(1, N))


def pallas_linear_residual(x, w, bias, residual):
    M, K = x.shape
    N = w.shape[1]
    tm, tn, tk = _tile(M, 256), _tile(N, 256), _tile(K, 512)
    cost = pl.CostEstimate(flops=2 * M * N * K, transcendentals=0,
                           bytes_accessed=2 * (M * K + K * N + 2 * M * N))
    return pl.pallas_call(
        _linear_residual_kernel,
        out_shape=jax.ShapeDtypeStruct((M, N), residual.dtype),
        grid=(M // tm, N // tn, K // tk),
        in_specs=[
            pl.BlockSpec((tm, tk), lambda i, j, k: (i, k)),
            pl.BlockSpec((tk, tn), lambda i, j, k: (k, j)),
            pl.BlockSpec((1, tn), lambda i, j, k: (0, j)),
            pl.BlockSpec((tm, tn), lambda i, j, k: (i, j)),
        ],
        out_specs=pl.BlockSpec((tm, tn), lambda i, j, k: (i, j)),
        scratch_shapes=[pltpu.VMEM((tm, tn), jnp.float32)],
        compiler_params=pltpu.CompilerParams(
            dimension_semantics=("parallel", "parallel", "arbitrary"),
            vmem_limit_bytes=_VMEM_LIMIT),
        cost_estimate=cost,
    )(x, w, bias.reshape(1, N), residual)


def pallas_lm_head(x, ln_g, ln_b, wte):
    M, D = x.shape
    V = wte.shape[0]
    tm, tv = _tile(M, 256), _tile(V, 256)
    cost = pl.CostEstimate(flops=2 * M * V * D, transcendentals=0,
                           bytes_accessed=2 * (M * D + V * D) + 4 * M * V)
    return pl.pallas_call(
        _lm_head_kernel,
        out_shape=jax.ShapeDtypeStruct((M, V), jnp.float32),
        grid=(M // tm, V // tv),
        in_specs=[
            pl.BlockSpec((tm, D), lambda i, j: (i, 0)),
            pl.BlockSpec((1, D), lambda i, j: (0, 0)),
            pl.BlockSpec((1, D), lambda i, j: (0, 0)),
            pl.BlockSpec((tv, D), lambda i, j: (j, 0)),       # wte stays (V, D): no .T
        ],
        out_specs=pl.BlockSpec((tm, tv), lambda i, j: (i, j)),
        compiler_params=pltpu.CompilerParams(
            dimension_semantics=("parallel", "parallel"),
            vmem_limit_bytes=_VMEM_LIMIT),
        cost_estimate=cost,
    )(x, ln_g.reshape(1, D), ln_b.reshape(1, D), wte)


def pallas_flash_attention(qkv, mask_bias, n_heads):
    """qkv: (B, S, 3D) fused buffer; mask_bias: (B, 1, S) additive. Out: (B, S, D)."""
    B, S, three_d = qkv.shape
    D = three_d // 3
    Dh = D // n_heads
    tq, tkv = _tile(S, 256), _tile(S, 256)
    kernel = functools.partial(_flash_attn_kernel, scale=1.0 / math.sqrt(Dh))
    # ~half the score/PV flops survive causal block-skipping.
    cost = pl.CostEstimate(
        flops=2 * B * n_heads * S * S * Dh,          # QK^T + PV, upper bound
        transcendentals=B * n_heads * S * S // 2,
        bytes_accessed=2 * (3 * B * S * D + B * S * D))

    # Q/K/V are read straight out of the fused QKV buffer via column-block offsets
    # (head h -> block h / h+H / h+2H), and the output lands directly in (B,S,D).
    q_spec = pl.BlockSpec((pl.Squeezed(), tq, Dh),
                          lambda b, h, qi, ki: (b, qi, h))
    k_spec = pl.BlockSpec((pl.Squeezed(), tkv, Dh),
                          lambda b, h, qi, ki: (b, ki, h + n_heads))
    v_spec = pl.BlockSpec((pl.Squeezed(), tkv, Dh),
                          lambda b, h, qi, ki: (b, ki, h + 2 * n_heads))
    mask_spec = pl.BlockSpec((pl.Squeezed(), 1, tkv),
                             lambda b, h, qi, ki: (b, 0, ki))
    out_spec = pl.BlockSpec((pl.Squeezed(), tq, Dh),
                            lambda b, h, qi, ki: (b, qi, h))

    return pl.pallas_call(
        kernel,
        out_shape=jax.ShapeDtypeStruct((B, S, D), qkv.dtype),
        grid=(B, n_heads, S // tq, S // tkv),
        in_specs=[q_spec, k_spec, v_spec, mask_spec],
        out_specs=out_spec,
        scratch_shapes=[
            pltpu.VMEM((tq, 1), jnp.float32),   # running max
            pltpu.VMEM((tq, 1), jnp.float32),   # running denom
            pltpu.VMEM((tq, Dh), jnp.float32),  # output accumulator
        ],
        compiler_params=pltpu.CompilerParams(
            dimension_semantics=("parallel", "parallel", "parallel", "arbitrary"),
            vmem_limit_bytes=_VMEM_LIMIT),
        cost_estimate=cost,
    )(qkv, qkv, qkv, mask_bias)


# ------------------------------- Model glue -------------------------------- #

def init_params(key, vocab, d_model, n_heads, n_layers, d_ff, max_pos):
    scale = 0.02
    keys = jax.random.split(key, 2 + n_layers)

    def w(k, shape):  # bf16 weights for the MXU; f32 accumulation in-kernel.
        return (scale * jax.random.normal(k, shape, jnp.float32)).astype(jnp.bfloat16)

    params = {
        "config": {"d_model": d_model, "n_heads": n_heads},
        "wte": w(keys[0], (vocab, d_model)),
        "wpe": w(keys[1], (max_pos, d_model)),
        "lnf_g": jnp.ones((d_model,), jnp.float32),
        "lnf_b": jnp.zeros((d_model,), jnp.float32),
        "layers": [],
    }
    for i in range(n_layers):
        lk = jax.random.split(keys[2 + i], 4)
        params["layers"].append({
            "ln1_g": jnp.ones((d_model,), jnp.float32),
            "ln1_b": jnp.zeros((d_model,), jnp.float32),
            "w_qkv": w(lk[0], (d_model, 3 * d_model)),
            "b_qkv": jnp.zeros((3 * d_model,), jnp.float32),
            "w_o": w(lk[1], (d_model, d_model)),
            "b_o": jnp.zeros((d_model,), jnp.float32),
            "ln2_g": jnp.ones((d_model,), jnp.float32),
            "ln2_b": jnp.zeros((d_model,), jnp.float32),
            "w_fc": w(lk[2], (d_model, d_ff)),
            "b_fc": jnp.zeros((d_ff,), jnp.float32),
            "w_proj": w(lk[3], (d_ff, d_model)),
            "b_proj": jnp.zeros((d_model,), jnp.float32),
        })
    return params


def model_wrapper_forward(params, input_ids, attention_mask, labels=None):
    """Equivalent of ModelWrapper.forward: returns logits [B, S, V]."""
    del labels  # HF would compute a loss from labels; logits are unchanged.
    B, S = input_ids.shape
    D = params["config"]["d_model"]
    H = params["config"]["n_heads"]

    # TODO(synk): token-id embedding gather stays in plain JAX (data-dependent HBM gather).
    x = params["wte"][input_ids] + params["wpe"][:S][None, :, :]
    h = x.reshape(B * S, D).astype(jnp.bfloat16)

    # Additive key-padding bias, broadcast over query rows inside the kernel.
    mask_bias = ((1.0 - attention_mask.astype(jnp.float32)) * _NEG_INF).reshape(B, 1, S)

    for layer in params["layers"]:
        # --- attention block: fused LN+QKV -> flash attention -> fused out-proj+residual
        qkv = pallas_fused_ln_linear(h, layer["ln1_g"], layer["ln1_b"],
                                     layer["w_qkv"], layer["b_qkv"])          # (B*S, 3D)
        a = pallas_flash_attention(qkv.reshape(B, S, 3 * D), mask_bias, H)    # (B, S, D)
        h = pallas_linear_residual(a.reshape(B * S, D),
                                   layer["w_o"], layer["b_o"], h)
        # --- MLP block: fused LN+FC(+GELU) -> fused proj+residual
        f = pallas_fused_ln_linear(h, layer["ln2_g"], layer["ln2_b"],
                                   layer["w_fc"], layer["b_fc"], activation="gelu")
        h = pallas_linear_residual(f, layer["w_proj"], layer["b_proj"], h)

    # Final LN + tied LM head, wte kept (V, D) — no HBM transpose.
    V = params["wte"].shape[0]
    logits = pallas_lm_head(h, params["lnf_g"], params["lnf_b"], params["wte"])
    return logits.reshape(B, S, V)


# ---------------------------------- Main ------------------------------------ #

if __name__ == "__main__":
    B, S = 2, 8                       # batch, sequence
    V, D, H, L, F = 256, 256, 2, 2, 512   # vocab, hidden, heads (Dh=128), layers, ffn

    key = jax.random.PRNGKey(0)
    pkey, ikey = jax.random.split(key)

    params = init_params(pkey, V, D, H, L, F, max_pos=S)

    input_ids = jax.random.randint(ikey, (B, S), 0, V, dtype=jnp.int32)
    attention_mask = jnp.ones((B, S), jnp.float32).at[1, -2:].set(0.0)  # some padding
    labels = input_ids  # accepted but (as in the wrapper) does not change logits

    logits = model_wrapper_forward(params, input_ids, attention_mask, labels)
    logits = jax.block_until_ready(logits)

    assert logits.shape == (B, S, V), logits.shape
    assert bool(jnp.all(jnp.isfinite(logits)))
    print("KERNEL_OK")
</pallas_src>

<mosaic_0001>
module attributes {stable_mosaic.version = 11 : i64} {
  func.func @_ln_linear_kernel(%arg0: i32, %arg1: i32, %arg2: memref<16x256xbf16, #tpu.memory_space<vmem>>, %arg3: memref<1x256xf32, #tpu.memory_space<vmem>>, %arg4: memref<1x256xf32, #tpu.memory_space<vmem>>, %arg5: memref<256x256xbf16, #tpu.memory_space<vmem>>, %arg6: memref<1x256xf32, #tpu.memory_space<vmem>>, %arg7: memref<16x256xbf16, #tpu.memory_space<vmem>>) attributes {dimension_semantics = [#tpu.dimension_semantics<parallel>, #tpu.dimension_semantics<parallel>], iteration_bounds = array<i64: 1, 3>, scalar_prefetch = 0 : i64, scratch_operands = 0 : i64, tpu.core_type = #tpu.core_type<tc>, window_params = [{transform_indices = @transform_0, window_bounds = array<i64: 16, 256>}, {pipeline_mode = #tpu.pipeline_mode<synchronous>, transform_indices = @transform_1, window_bounds = array<i64: 1, 256>}, {pipeline_mode = #tpu.pipeline_mode<synchronous>, transform_indices = @transform_2, window_bounds = array<i64: 1, 256>}, {transform_indices = @transform_3, window_bounds = array<i64: 256, 256>}, {transform_indices = @transform_4, window_bounds = array<i64: 1, 256>}, {transform_indices = @transform_5, window_bounds = array<i64: 16, 256>}]} {
    %c0 = arith.constant 0 : index
    %c0_0 = arith.constant 0 : index
    %0 = vector.load %arg2[%c0, %c0_0] : memref<16x256xbf16, #tpu.memory_space<vmem>>, vector<16x256xbf16>
    %1 = arith.extf %0 : vector<16x256xbf16> to vector<16x256xf32>
    %cst = arith.constant dense<0.000000e+00> : vector<16xf32>
    %2 = vector.multi_reduction <add>, %1, %cst [1] : vector<16x256xf32> to vector<16xf32>
    %3 = vector.shape_cast %2 : vector<16xf32> to vector<16x1xf32>
    %cst_1 = arith.constant 2.560000e+02 : f32
    %4 = vector.broadcast %cst_1 : f32 to vector<16x1xf32>
    %5 = arith.divf %3, %4 : vector<16x1xf32>
    %6 = vector.broadcast %5 : vector<16x1xf32> to vector<16x256xf32>
    %7 = arith.subf %1, %6 : vector<16x256xf32>
    %8 = vector.broadcast %5 : vector<16x1xf32> to vector<16x256xf32>
    %9 = arith.subf %1, %8 : vector<16x256xf32>
    %10 = arith.mulf %7, %9 : vector<16x256xf32>
    %cst_2 = arith.constant dense<0.000000e+00> : vector<16xf32>
    %11 = vector.multi_reduction <add>, %10, %cst_2 [1] : vector<16x256xf32> to vector<16xf32>
    %12 = vector.shape_cast %11 : vector<16xf32> to vector<16x1xf32>
    %cst_3 = arith.constant 2.560000e+02 : f32
    %13 = vector.broadcast %cst_3 : f32 to vector<16x1xf32>
    %14 = arith.divf %12, %13 : vector<16x1xf32>
    %15 = vector.broadcast %5 : vector<16x1xf32> to vector<16x256xf32>
    %16 = arith.subf %1, %15 : vector<16x256xf32>
    %cst_4 = arith.constant 9.99999974E-6 : f32
    %17 = vector.broadcast %cst_4 : f32 to vector<16x1xf32>
    %18 = arith.addf %14, %17 : vector<16x1xf32>
    %19 = math.rsqrt %18 : vector<16x1xf32>
    %20 = vector.broadcast %19 : vector<16x1xf32> to vector<16x256xf32>
    %21 = arith.mulf %16, %20 : vector<16x256xf32>
    %c0_5 = arith.constant 0 : index
    %c0_6 = arith.constant 0 : index
    %22 = vector.load %arg3[%c0_5, %c0_6] : memref<1x256xf32, #tpu.memory_space<vmem>>, vector<1x256xf32>
    %23 = vector.broadcast %22 : vector<1x256xf32> to vector<16x256xf32>
    %24 = arith.mulf %21, %23 : vector<16x256xf32>
    %c0_7 = arith.constant 0 : index
    %c0_8 = arith.constant 0 : index
    %25 = vector.load %arg4[%c0_7, %c0_8] : memref<1x256xf32, #tpu.memory_space<vmem>>, vector<1x256xf32>
    %26 = vector.broadcast %25 : vector<1x256xf32> to vector<16x256xf32>
    %27 = arith.addf %24, %26 : vector<16x256xf32>
    %28 = arith.truncf %27 : vector<16x256xf32> to vector<16x256xbf16>
    %c0_9 = arith.constant 0 : index
    %c0_10 = arith.constant 0 : index
    %29 = vector.load %arg5[%c0_9, %c0_10] : memref<256x256xbf16, #tpu.memory_space<vmem>>, vector<256x256xbf16>
    %cst_11 = arith.constant dense<0.000000e+00> : vector<16x256xf32>
    %30 = tpu.matmul %28, %29, %cst_11 {dimension_numbers = #tpu.dot_dimension_numbers<[1], [0], [0], [1], [0, 0, 1, 1], [], []>} : vector<16x256xbf16>, vector<256x256xbf16>, vector<16x256xf32> -> vector<16x256xf32>
    %c0_12 = arith.constant 0 : index
    %c0_13 = arith.constant 0 : index
    %31 = vector.load %arg6[%c0_12, %c0_13] : memref<1x256xf32, #tpu.memory_space<vmem>>, vector<1x256xf32>
    %32 = vector.broadcast %31 : vector<1x256xf32> to vector<16x256xf32>
    %33 = arith.addf %30, %32 : vector<16x256xf32>
    %34 = arith.truncf %33 : vector<16x256xf32> to vector<16x256xbf16>
    %c0_14 = arith.constant 0 : index
    %c0_15 = arith.constant 0 : index
    %35 = vector.load %arg7[%c0_14, %c0_15] : memref<16x256xbf16, #tpu.memory_space<vmem>>, vector<16x256xbf16>
    tpu.vector_store %arg7[%c0_14, %c0_15], %34 {strides = array<i32>} : memref<16x256xbf16, #tpu.memory_space<vmem>>, vector<16x256xbf16>,
    return
  }
  func.func @transform_0(%arg0: i32, %arg1: i32) -> (i32, i32) {
    %c0_i32 = arith.constant 0 : i32
    %c0_i32_0 = arith.constant 0 : i32
    return %arg0, %c0_i32 : i32, i32
  }
  func.func @transform_1(%arg0: i32, %arg1: i32) -> (i32, i32) {
    %c0_i32 = arith.constant 0 : i32
    %c0_i32_0 = arith.constant 0 : i32
    %c0_i32_1 = arith.constant 0 : i32
    return %c0_i32, %c0_i32_0 : i32, i32
  }
  func.func @transform_2(%arg0: i32, %arg1: i32) -> (i32, i32) {
    %c0_i32 = arith.constant 0 : i32
    %c0_i32_0 = arith.constant 0 : i32
    %c0_i32_1 = arith.constant 0 : i32
    return %c0_i32, %c0_i32_0 : i32, i32
  }
  func.func @transform_3(%arg0: i32, %arg1: i32) -> (i32, i32) {
    %c0_i32 = arith.constant 0 : i32
    %c0_i32_0 = arith.constant 0 : i32
    return %c0_i32, %arg1 : i32, i32
  }
  func.func @transform_4(%arg0: i32, %arg1: i32) -> (i32, i32) {
    %c0_i32 = arith.constant 0 : i32
    %c0_i32_0 = arith.constant 0 : i32
    return %c0_i32, %arg1 : i32, i32
  }
  func.func @transform_5(%arg0: i32, %arg1: i32) -> (i32, i32) {
    %c0_i32 = arith.constant 0 : i32
    return %arg0, %arg1 : i32, i32
  }
}

</mosaic_0001>

<llo_original>
// kernel: tpu_custom_call.1
$region0: #{tpu_custom_call.1}
  #allocation0 [shape = 'u32[]', space=smem, size = 0x4, offset = 0x4, fixed_abs, tag = 'smem constant byte address 0x4 - core index']
  #allocation1 [shape = 'u32[144,128]{1,0:T(1,128)}', space=vmem, size = 0x12000, scoped, tag = 'internal scratch']
  %s0 = inlined_call_operand.hbm [shape: bf16[16,256], index: 0, kind: input, shape index: {}]
  %s1 = inlined_call_operand.vmem [shape: f32[1,256], index: 1, kind: input, shape index: {}]
  %s2 = inlined_call_operand.vmem [shape: f32[1,256], index: 2, kind: input, shape index: {}]
  %s3 = inlined_call_operand.hbm [shape: bf16[256,768], index: 3, kind: input, shape index: {}]
  %s4 = inlined_call_operand.vmem [shape: f32[1,768], index: 4, kind: input, shape index: {}]
  %s5 = inlined_call_operand.hbm [shape: bf16[16,768], index: 5, kind: output, shape index: {}]
  %s6 = sld [smem:[#allocation0]]
  $region61: #{tpu_custom_call.1} parent=0
    _
  %s8 = ssub.s32 1, %s6
  %s9 = scalar_select 0, %s8, %s6
  $region1: #{tpu_custom_call.1} parent=0
    #allocation2 [shape = 'u8[8192]{0}', space=vmem, size = 0x2000, scoped, tag = 'input window, operand 0, single buffered']
    #allocation3 [shape = 's32[2]{0}', space=sflag, size = 0x8, scoped, tag = 'scoped memory for tpu_custom_call.1']
    #allocation4 [shape = 's32[2]{0}', space=sflag, size = 0x8, scoped, tag = 'scoped memory for tpu_custom_call.1']
    #allocation5 [shape = 'u8[262144]{0}', space=vmem, size = 0x40000, scoped, tag = 'input window, operand 3']
    #allocation6 [shape = 's32[2]{0}', space=sflag, size = 0x8, scoped, tag = 'scoped memory for tpu_custom_call.1']
    #allocation7 [shape = 'u8[16384]{0}', space=vmem, size = 0x4000, scoped, tag = 'output window, operand 0']
    %10 = vsyncpa [#allocation3], 0
    %11 = vsyncpa [#allocation6], 0
    %s12 = scalar_lea.sflag [#allocation6], 1
    %13 = vsyncpa %s12, 0
    %14 = vsyncpa [#allocation4], 0
    %s15 = scalar_lea.sflag [#allocation4], 1
    %16 = vsyncpa %s15, 0
    loop: start=0, step=1, limit=5
    $region2: #{tpu_custom_call.1} parent=1 // loop_pre_header
      _
    $region3: #{tpu_custom_call.1} parent=1 // loop_header
      %s18 = sphi 0, %s22
      %p19 = scmp.ge.s32.totalorder %s18, 5
      %s25 = sphi 0, %s37
      %s26 = sphi 0, %s33
      %s27 = sphi 0, %s25
      %s28 = sphi 0, %s26
      %s29 = sphi 0, %s27
      %s30 = sphi 0, %s28
      %s40 = sphi 0, %s42
      %s43 = sphi 0, %s40
      %s44 = sphi 0, %s43
      %s60 = sphi 0, %s44
      %s64 = sphi 0, %s64
      %s66 = sphi 0, %s64
      %s67 = sphi 0, %s66
      %s81 = sphi 0, %s67
      %s85 = sphi 0, %s85
      %s87 = sphi 0, %s85
      %s88 = sphi 0, %s87
      %s102 = sphi 0, %s88
      %s108 = sphi 0, %s110
      %s111 = sphi 0, %s108
      %s112 = sphi 0, %s111
      %s128 = sphi 0, %s112
      %s134 = sphi 0, %s136
      %s137 = sphi 0, %s134
      %s138 = sphi 0, %s137
      %s154 = sphi 0, %s138
      %s162 = sphi 0, %s164
      %s165 = sphi 0, %s162
      %s166 = sphi 0, %s165
      %s182 = sphi 0, %s166
    $region4: #{tpu_custom_call.1} parent=1 // loop_header_branch
      %21 = sbr.rel (%p19) target = $region8
    $region5: #{tpu_custom_call.1} parent=1 // loop_body
      %s23 = ssub.s32 %s18, 1
      %s24 = ssub.s32 %s18, 2
      %s31 = sadd.s32 1, %s26
      %p32 = scmp.ge.s32.totalorder %s31, 3
      %s33 = scalar_select %p32, 0, %s31
      %s34 = sadd.s32 1, %s25
      %s35 = scalar_select %p32, %s34, %s25
      %p36 = scmp.ge.s32.totalorder %s35, 1
      %s37 = scalar_select %p36, 0, %s35
      %s38 = ssub.s32 %s25, %s37
      %p39 = scmp.eq.s32.totalorder %s38, 0
      %s41 = sadd.s32 %s40, 1
      %s42 = scalar_select %p39, %s40, %s41
      %p45 = pneg %p39
      %p46 = scmp.eq.s32.totalorder %s18, 2
      %p47 = por %p45, %p46
      %p48 = scmp.ne.s32.totalorder %s40, %s43
      %p49 = scmp.eq.s32.totalorder %s18, 0
      %p50 = por %p48, %p49
      %p51 = scmp.ne.s32.totalorder %s40, %s43
      %p52 = scmp.eq.s32.totalorder %s23, 2
      %p53 = por %p51, %p52
      %p54 = scmp.ne.s32.totalorder %s43, %s44
      %p55 = scmp.eq.s32.totalorder %s23, 0
      %p56 = por %p54, %p55
      %p57 = scmp.ne.s32.totalorder %s43, %s44
      %p58 = scmp.eq.s32.totalorder %s24, 2
      %p59 = por %p57, %p58
      %p61 = scmp.ne.s32.totalorder %s44, %s60
      %p62 = scmp.eq.s32.totalorder %s24, 0
      %p63 = por %p61, %p62
      %s65 = sadd.s32 %s64, 1
      %p68 = scmp.eq.s32.totalorder %s18, 2
      %p69 = scmp.ne.s32.totalorder %s64, %s66
      %p70 = scmp.eq.s32.totalorder %s18, 0
      %p71 = por %p69, %p70
      %p72 = scmp.ne.s32.totalorder %s64, %s66
      %p73 = scmp.eq.s32.totalorder %s23, 2
      %p74 = por %p72, %p73
      %p75 = scmp.ne.s32.totalorder %s66, %s67
      %p76 = scmp.eq.s32.totalorder %s23, 0
      %p77 = por %p75, %p76
      %p78 = scmp.ne.s32.totalorder %s66, %s67
      %p79 = scmp.eq.s32.totalorder %s24, 2
      %p80 = por %p78, %p79
      %p82 = scmp.ne.s32.totalorder %s67, %s81
      %p83 = scmp.eq.s32.totalorder %s24, 0
      %p84 = por %p82, %p83
      %s86 = sadd.s32 %s85, 1
      %p89 = scmp.eq.s32.totalorder %s18, 2
      %p90 = scmp.ne.s32.totalorder %s85, %s87
      %p91 = scmp.eq.s32.totalorder %s18, 0
      %p92 = por %p90, %p91
      %p93 = scmp.ne.s32.totalorder %s85, %s87
      %p94 = scmp.eq.s32.totalorder %s23, 2
      %p95 = por %p93, %p94
      %p96 = scmp.ne.s32.totalorder %s87, %s88
      %p97 = scmp.eq.s32.totalorder %s23, 0
      %p98 = por %p96, %p97
      %p99 = scmp.ne.s32.totalorder %s87, %s88
      %p100 = scmp.eq.s32.totalorder %s24, 2
      %p101 = por %p99, %p100
      %p103 = scmp.ne.s32.totalorder %s88, %s102
      %p104 = scmp.eq.s32.totalorder %s24, 0
      %p105 = por %p103, %p104
      %s106 = ssub.s32 %s26, %s33
      %p107 = scmp.eq.s32.totalorder %s106, 0
      %s109 = sadd.s32 %s108, 1
      %s110 = scalar_select %p107, %s108, %s109
      %p113 = pneg %p107
      %p114 = scmp.eq.s32.totalorder %s18, 2
      %p115 = por %p113, %p114
      %p116 = scmp.ne.s32.totalorder %s108, %s111
      %p117 = scmp.eq.s32.totalorder %s18, 0
      %p118 = por %p116, %p117
      %p119 = scmp.ne.s32.totalorder %s108, %s111
      %p120 = scmp.eq.s32.totalorder %s23, 2
      %p121 = por %p119, %p120
      %p122 = scmp.ne.s32.totalorder %s111, %s112
      %p123 = scmp.eq.s32.totalorder %s23, 0
      %p124 = por %p122, %p123
      %p125 = scmp.ne.s32.totalorder %s111, %s112
      %p126 = scmp.eq.s32.totalorder %s24, 2
      %p127 = por %p125, %p126
      %p129 = scmp.ne.s32.totalorder %s112, %s128
      %p130 = scmp.eq.s32.totalorder %s24, 0
      %p131 = por %p129, %p130
      %s132 = ssub.s32 %s26, %s33
      %p133 = scmp.eq.s32.totalorder %s132, 0
      %s135 = sadd.s32 %s134, 1
      %s136 = scalar_select %p133, %s134, %s135
      %p139 = pneg %p133
      %p140 = scmp.eq.s32.totalorder %s18, 2
      %p141 = por %p139, %p140
      %p142 = scmp.ne.s32.totalorder %s134, %s137
      %p143 = scmp.eq.s32.totalorder %s18, 0
      %p144 = por %p142, %p143
      %p145 = scmp.ne.s32.totalorder %s134, %s137
      %p146 = scmp.eq.s32.totalorder %s23, 2
      %p147 = por %p145, %p146
      %p148 = scmp.ne.s32.totalorder %s137, %s138
      %p149 = scmp.eq.s32.totalorder %s23, 0
      %p150 = por %p148, %p149
      %p151 = scmp.ne.s32.totalorder %s137, %s138
      %p152 = scmp.eq.s32.totalorder %s24, 2
      %p153 = por %p151, %p152
      %p155 = scmp.ne.s32.totalorder %s138, %s154
      %p156 = scmp.eq.s32.totalorder %s24, 0
      %p157 = por %p155, %p156
      %s158 = ssub.s32 %s25, %s37
      %s159 = ssub.s32 %s26, %s33
      %s160 = sor.u32 %s158, %s159
      %p161 = scmp.eq.s32.totalorder %s160, 0
      %s163 = sadd.s32 %s162, 1
      %s164 = scalar_select %p161, %s162, %s163
      %p167 = pneg %p161
      %p168 = scmp.eq.s32.totalorder %s18, 2
      %p169 = por %p167, %p168
      %p170 = scmp.ne.s32.totalorder %s162, %s165
      %p171 = scmp.eq.s32.totalorder %s18, 0
      %p172 = por %p170, %p171
      %p173 = scmp.ne.s32.totalorder %s162, %s165
      %p174 = scmp.eq.s32.totalorder %s23, 2
      %p175 = por %p173, %p174
      %p176 = scmp.ne.s32.totalorder %s165, %s166
      %p177 = scmp.eq.s32.totalorder %s23, 0
      %p178 = por %p176, %p177
      %p179 = scmp.ne.s32.totalorder %s165, %s166
      %p180 = scmp.eq.s32.totalorder %s24, 2
      %p181 = por %p179, %p180
      %p183 = scmp.ne.s32.totalorder %s166, %s182
      %p184 = scmp.eq.s32.totalorder %s24, 0
      %p185 = por %p183, %p184
      %p186 = scmp.le.s32.totalorder 1, %s18
      %p187 = scmp.lt.s32.totalorder %s18, 4
      %p188 = pnand %p186, %p187
      %p189 = pneg %p188
      // Predicated region
      $region9: #{tpu_custom_call.1} parent=5 // pred_check
        _
      $region10: #{tpu_custom_call.1} parent=5 // pred_check_branch
        %191 = sbr.rel (%p188) target = $region12
      $region11: #{tpu_custom_call.1} parent=5 // pred_region
        %s192 = ssub.s32 %s18, 1
        // Predicated region
        $region13: #{tpu_custom_call.1} parent=11 // pred_check
          %p193 = pneg %p56
        $region14: #{tpu_custom_call.1} parent=11 // pred_check_branch
          %195 = sbr.rel (%p193) target = $region16
        $region15: #{tpu_custom_call.1} parent=11 // pred_region
          %s196 = smul.u32 2, %s27
          %s198 = ssub.s32 256, 256
          %199 = vsyncadd [#allocation3], %s198
          %s200 = smul.addr %s196, 2
          %s201 = smul.addr %s200, 64
          %s202 = scalar_lea.hbm %s0, %s201
          %s203 = sshll.u32 [#allocation2], 4
          %s204 = int_to_ptr.vmem [resolvable:$true] %s203
          %209 = dma.hbm_to_vmem [thread:$0]  %s202, 256, %s204, [#allocation3], 128, 128, 8
        $region16: #{tpu_custom_call.1} parent=11 // pred_fallthru
          _
        // Predicated region
        $region17: #{tpu_custom_call.1} parent=11 // pred_check
          %p210 = pneg %p77
        $region18: #{tpu_custom_call.1} parent=11 // pred_check_branch
          %212 = sbr.rel (%p210) target = $region20
        $region19: #{tpu_custom_call.1} parent=11 // pred_region
          _
        $region20: #{tpu_custom_call.1} parent=11 // pred_fallthru
          _
        // Predicated region
        $region21: #{tpu_custom_call.1} parent=11 // pred_check
          %p213 = pneg %p98
        $region22: #{tpu_custom_call.1} parent=11 // pred_check_branch
          %215 = sbr.rel (%p213) target = $region24
        $region23: #{tpu_custom_call.1} parent=11 // pred_region
          _
        $region24: #{tpu_custom_call.1} parent=11 // pred_fallthru
          _
      $region12: #{tpu_custom_call.1} parent=5 // pred_fallthru
        _
      %p216 = scmp.lt.s32.totalorder %s18, 3
      // Predicated region
      $region25: #{tpu_custom_call.1} parent=5 // pred_check
        %p217 = pneg %p216
      $region26: #{tpu_custom_call.1} parent=5 // pred_check_branch
        %219 = sbr.rel (%p217) target = $region28
      $region27: #{tpu_custom_call.1} parent=5 // pred_region
        // Predicated region
        $region29: #{tpu_custom_call.1} parent=27 // pred_check
          %p220 = pneg %p118
        $region30: #{tpu_custom_call.1} parent=27 // pred_check_branch
          %222 = sbr.rel (%p220) target = $region32
        $region31: #{tpu_custom_call.1} parent=27 // pred_region
          %s223 = sand.u32 %s108, 1
          %s224 = scalar_lea.sflag [#allocation6], %s223
          %s225 = sand.u32 %s108, 1
          %s226 = smul.addr %s225, 256
          %s227 = scalar_lea.vmem [#allocation5], %s226
          %s228 = smul.u32 2, %s26
          %s230 = ssub.s32 4096, 4096
          %231 = vsyncadd %s224, %s230
          %s232 = smul.addr %s228, 64
          %s233 = scalar_lea.hbm %s3, %s232
          %s234 = sshll.u32 %s227, 4
          %s235 = int_to_ptr.vmem [resolvable:$true] %s234
          %240 = dma.hbm_to_vmem [thread:$0]  %s233, 4096, %s235, %s224, 384, 128, 8
        $region32: #{tpu_custom_call.1} parent=27 // pred_fallthru
          _
        // Predicated region
        $region33: #{tpu_custom_call.1} parent=27 // pred_check
          %p241 = pneg %p144
        $region34: #{tpu_custom_call.1} parent=27 // pred_check_branch
          %243 = sbr.rel (%p241) target = $region36
        $region35: #{tpu_custom_call.1} parent=27 // pred_region
          %s244 = smul.u32 2, %s26
          %p245 = scmp.lt.s32.totalorder %s244, 5
          %s246 = scalar_select %p245, %s244, 5
          %s247 = scalar_lea.vmem %s4, %s246
          %s248 = smul.u32 2, %s26
        $region36: #{tpu_custom_call.1} parent=27 // pred_fallthru
          _
      $region28: #{tpu_custom_call.1} parent=5 // pred_fallthru
        _
      %p249 = scmp.le.s32.totalorder 1, %s18
      %p250 = scmp.lt.s32.totalorder %s18, 4
      %p251 = pnand %p249, %p250
      %p252 = pneg %p251
      // Predicated region
      $region37: #{tpu_custom_call.1} parent=5 // pred_check
        _
      $region38: #{tpu_custom_call.1} parent=5 // pred_check_branch
        %254 = sbr.rel (%p251) target = $region40
      $region39: #{tpu_custom_call.1} parent=5 // pred_region
        %s255 = ssub.s32 %s18, 1
        // Predicated region
        $region41: #{tpu_custom_call.1} parent=39 // pred_check
          %p256 = pneg %p56
        $region42: #{tpu_custom_call.1} parent=39 // pred_check_branch
          %258 = sbr.rel (%p256) target = $region44
        $region43: #{tpu_custom_call.1} parent=39 // pred_region
          %259 = dma.done [#allocation3], 256
        $region44: #{tpu_custom_call.1} parent=39 // pred_fallthru
          _
        %s260 = sand.u32 %s111, 1
        %s261 = scalar_lea.sflag [#allocation6], %s260
        %s262 = sand.u32 %s111, 1
        %s263 = smul.addr %s262, 256
        %s264 = scalar_lea.vmem [#allocation5], %s263
        // Predicated region
        $region45: #{tpu_custom_call.1} parent=39 // pred_check
          %p265 = pneg %p124
        $region46: #{tpu_custom_call.1} parent=39 // pred_check_branch
          %267 = sbr.rel (%p265) target = $region48
        $region47: #{tpu_custom_call.1} parent=39 // pred_region
          %268 = dma.done %s261, 4096
        $region48: #{tpu_custom_call.1} parent=39 // pred_fallthru
          _
        %p269 = pneg %p56
        %p270 = pneg %p53
        %p271 = pneg %p77
        %p272 = pneg %p74
        %p273 = pneg %p98
        %p274 = pneg %p95
        %s275 = sand.u32 %s111, 1
        %s276 = scalar_lea.sflag [#allocation6], %s275
        %s277 = sand.u32 %s111, 1
        %s278 = smul.addr %s277, 256
        %s279 = scalar_lea.vmem [#allocation5], %s278
        %p280 = pneg %p124
        %p281 = pneg %p121
        %s282 = smul.u32 2, %s28
        %p283 = scmp.lt.s32.totalorder %s282, 5
        %s284 = scalar_select %p283, %s282, 5
        %s285 = scalar_lea.vmem %s4, %s284
        %p286 = pneg %p150
        %p287 = pneg %p147
        %p288 = pneg %p178
        %p289 = pneg %p175
        %s290 = sand.u32 %s165, 1
        %s291 = scalar_lea.sflag [#allocation4], %s290
        %s292 = sand.u32 %s165, 1
        %s293 = smul.addr %s292, 16
        %s294 = scalar_lea.vmem [#allocation7], %s293
        %s295 = smul.u32 2, %s27
        %s296 = smul.u32 2, %s28
        %s297 = smul.u32 2, %s28
        %p298 = scmp.lt.s32.totalorder %s297, 5
        %s299 = scalar_select %p298, %s297, 5
        %s300 = scalar_lea.vmem %s4, %s299
        %s301 = smul.u32 2, %s28
        %s302 = smul.u32 2, %s27
        %s303 = smul.u32 2, %s28
        %v304 = vld [vmem:[#allocation2] sm:$0xff]
        %v305 = vld [vmem:[#allocation2 + $0x8] sm:$0xff]
        %v306 = vunpack.c.l.bf16 %v304
        %v307 = vunpack.c.h.bf16 %v304
        %v308 = vunpack.c.l.bf16 %v305
        %v309 = vunpack.c.h.bf16 %v305
        %v310 = vadd.f32 %v306, %v307
        %311 = vadd.xlane.f32.xlu0 %v310
        %v312 = vpop.xlane.xlu0 %311
        %v313 = vadd.f32 %v308, %v309
        %314 = vadd.xlane.f32.xlu0 %v313
        %v315 = vpop.xlane.xlu0 %314
        %v316 = vrcp.pop 256.0
        %v317 = vmul.f32 %v312, %v316
        %v318 = vmul.f32 %v315, %v316
        %v319 = vsub.f32 %v306, %v317
        %v320 = vsub.f32 %v307, %v317
        %v321 = vsub.f32 %v308, %v318
        %v322 = vsub.f32 %v309, %v318
        %v323 = vmul.f32 %v319, %v319
        %v324 = vmul.f32 %v320, %v320
        %v325 = vmul.f32 %v321, %v321
        %v326 = vmul.f32 %v322, %v322
        %v327 = vadd.f32 %v323, %v324
        %328 = vadd.xlane.f32.xlu0 %v327
        %v329 = vpop.xlane.xlu0 %328
        %v330 = vadd.f32 %v325, %v326
        %331 = vadd.xlane.f32.xlu0 %v330
        %v332 = vpop.xlane.xlu0 %331
        %v333 = vmul.f32 %v329, %v316
        %v334 = vmul.f32 %v332, %v316
        %v335 = vadd.f32 %v333, 1e-05
        %v336 = vadd.f32 %v334, 1e-05
        %v337 = vrsqrt.pop %v335
        %v338 = vrsqrt.pop %v336
        %v339 = vmul.f32 %v319, %v337
        %v340 = vmul.f32 %v320, %v337
        %v341 = vmul.f32 %v321, %v338
        %v342 = vmul.f32 %v322, %v338
        %v343 = vld [vmem:[%s1] sm:$0x3]
        %v345 = vlaneseq
        %v346 = vshrl.u32 %v345, 7
        %v347 = vsub.s32 0, %v346
        %v348 = vrot.slane %v343, %v347
        %v349 = vlaneseq
        %v350 = vshrl.u32 %v349, 7
        %v351 = vsub.s32 1, %v350
        %v352 = vrot.slane %v343, %v351
        %v355 = vmul.f32 %v339, %v348
        %v356 = vmul.f32 %v340, %v352
        %v357 = vmul.f32 %v341, %v348
        %v358 = vmul.f32 %v342, %v352
        %v359 = vld [vmem:[%s2] sm:$0x3]
        %v361 = vlaneseq
        %v362 = vshrl.u32 %v361, 7
        %v363 = vsub.s32 0, %v362
        %v364 = vrot.slane %v359, %v363
        %v365 = vlaneseq
        %v366 = vshrl.u32 %v365, 7
        %v367 = vsub.s32 1, %v366
        %v368 = vrot.slane %v359, %v367
        %v371 = vadd.f32 %v355, %v364
        %v372 = vadd.f32 %v356, %v368
        %v373 = vadd.f32 %v357, %v364
        %v374 = vadd.f32 %v358, %v368
        %v375 = vpack.c.bf16 %v373, %v371
        %v376 = vpack.c.bf16 %v374, %v372
        %v377 = vld [vmem:[%s264] sm:$0xff]
        %v378 = vld [vmem:[%s264 + $0x8] sm:$0xff]
        %v379 = vld [vmem:[%s264 + $0x10] sm:$0xff]
        %v380 = vld [vmem:[%s264 + $0x18] sm:$0xff]
        %v381 = vld [vmem:[%s264 + $0x20] sm:$0xff]
        %v382 = vld [vmem:[%s264 + $0x28] sm:$0xff]
        %v383 = vld [vmem:[%s264 + $0x30] sm:$0xff]
        %v384 = vld [vmem:[%s264 + $0x38] sm:$0xff]
        %v385 = vld [vmem:[%s264 + $0x40] sm:$0xff]
        %v386 = vld [vmem:[%s264 + $0x48] sm:$0xff]
        %v387 = vld [vmem:[%s264 + $0x50] sm:$0xff]
        %v388 = vld [vmem:[%s264 + $0x58] sm:$0xff]
        %v389 = vld [vmem:[%s264 + $0x60] sm:$0xff]
        %v390 = vld [vmem:[%s264 + $0x68] sm:$0xff]
        %v391 = vld [vmem:[%s264 + $0x70] sm:$0xff]
        %v392 = vld [vmem:[%s264 + $0x78] sm:$0xff]
        %v393 = vld [vmem:[%s264 + $0x80] sm:$0xff]
        %v394 = vld [vmem:[%s264 + $0x88] sm:$0xff]
        %v395 = vld [vmem:[%s264 + $0x90] sm:$0xff]
        %v396 = vld [vmem:[%s264 + $0x98] sm:$0xff]
        %v397 = vld [vmem:[%s264 + $0xa0] sm:$0xff]
        %v398 = vld [vmem:[%s264 + $0xa8] sm:$0xff]
        %v399 = vld [vmem:[%s264 + $0xb0] sm:$0xff]
        %v400 = vld [vmem:[%s264 + $0xb8] sm:$0xff]
        %v401 = vld [vmem:[%s264 + $0xc0] sm:$0xff]
        %v402 = vld [vmem:[%s264 + $0xc8] sm:$0xff]
        %v403 = vld [vmem:[%s264 + $0xd0] sm:$0xff]
        %v404 = vld [vmem:[%s264 + $0xd8] sm:$0xff]
        %v405 = vld [vmem:[%s264 + $0xe0] sm:$0xff]
        %v406 = vld [vmem:[%s264 + $0xe8] sm:$0xff]
        %v407 = vld [vmem:[%s264 + $0xf0] sm:$0xff]
        %v408 = vld [vmem:[%s264 + $0xf8] sm:$0xff]
        %v409 = vld [vmem:[%s300] sm:$0x3]
        %v411 = vlaneseq
        %v412 = vshrl.u32 %v411, 7
        %v413 = vsub.s32 0, %v412
        %v414 = vrot.slane %v409, %v413
        %v415 = vlaneseq
        %v416 = vshrl.u32 %v415, 7
        %v417 = vsub.s32 1, %v416
        %v418 = vrot.slane %v409, %v417
        %v453 = vunpack.c.l.b16 %v377
        %v454 = vunpack.c.h.b16 %v377
        %v455 = vunpack.c.l.b16 %v378
        %v456 = vunpack.c.h.b16 %v378
        %v457 = vunpack.c.l.b16 %v379
        %v458 = vunpack.c.h.b16 %v379
        %v459 = vunpack.c.l.b16 %v380
        %v460 = vunpack.c.h.b16 %v380
        %v461 = vunpack.c.l.b16 %v381
        %v462 = vunpack.c.h.b16 %v381
        %v463 = vunpack.c.l.b16 %v382
        %v464 = vunpack.c.h.b16 %v382
        %v465 = vunpack.c.l.b16 %v383
        %v466 = vunpack.c.h.b16 %v383
        %v467 = vunpack.c.l.b16 %v384
        %v468 = vunpack.c.h.b16 %v384
        %v469 = vunpack.c.l.b16 %v385
        %v470 = vunpack.c.h.b16 %v385
        %v471 = vunpack.c.l.b16 %v386
        %v472 = vunpack.c.h.b16 %v386
        %v473 = vunpack.c.l.b16 %v387
        %v474 = vunpack.c.h.b16 %v387
        %v475 = vunpack.c.l.b16 %v388
        %v476 = vunpack.c.h.b16 %v388
        %v477 = vunpack.c.l.b16 %v389
        %v478 = vunpack.c.h.b16 %v389
        %v479 = vunpack.c.l.b16 %v390
        %v480 = vunpack.c.h.b16 %v390
        %v481 = vunpack.c.l.b16 %v391
        %v482 = vunpack.c.h.b16 %v391
        %v483 = vunpack.c.l.b16 %v392
        %v484 = vunpack.c.h.b16 %v392
        %v485 = vunpack.c.l.b16 %v393
        %v486 = vunpack.c.h.b16 %v393
        %v487 = vunpack.c.l.b16 %v394
        %v488 = vunpack.c.h.b16 %v394
        %v489 = vunpack.c.l.b16 %v395
        %v490 = vunpack.c.h.b16 %v395
        %v491 = vunpack.c.l.b16 %v396
        %v492 = vunpack.c.h.b16 %v396
        %v493 = vunpack.c.l.b16 %v397
        %v494 = vunpack.c.h.b16 %v397
        %v495 = vunpack.c.l.b16 %v398
        %v496 = vunpack.c.h.b16 %v398
        %v497 = vunpack.c.l.b16 %v399
        %v498 = vunpack.c.h.b16 %v399
        %v499 = vunpack.c.l.b16 %v400
        %v500 = vunpack.c.h.b16 %v400
        %v501 = vunpack.c.l.b16 %v401
        %v502 = vunpack.c.h.b16 %v401
        %v503 = vunpack.c.l.b16 %v402
        %v504 = vunpack.c.h.b16 %v402
        %v505 = vunpack.c.l.b16 %v403
        %v506 = vunpack.c.h.b16 %v403
        %v507 = vunpack.c.l.b16 %v404
        %v508 = vunpack.c.h.b16 %v404
        %v509 = vunpack.c.l.b16 %v405
        %v510 = vunpack.c.h.b16 %v405
        %v511 = vunpack.c.l.b16 %v406
        %v512 = vunpack.c.h.b16 %v406
        %v513 = vunpack.c.l.b16 %v407
        %v514 = vunpack.c.h.b16 %v407
        %v515 = vunpack.c.l.b16 %v408
        %v516 = vunpack.c.h.b16 %v408
        %v517 = vpack.c.b16 %v455, %v453
        %v518 = vpack.c.b16 %v456, %v454
        %v519 = vpack.c.b16 %v459, %v457
        %v520 = vpack.c.b16 %v460, %v458
        %v521 = vpack.c.b16 %v463, %v461
        %v522 = vpack.c.b16 %v464, %v462
        %v523 = vpack.c.b16 %v467, %v465
        %v524 = vpack.c.b16 %v468, %v466
        %v525 = vpack.c.b16 %v471, %v469
        %v526 = vpack.c.b16 %v472, %v470
        %v527 = vpack.c.b16 %v475, %v473
        %v528 = vpack.c.b16 %v476, %v474
        %v529 = vpack.c.b16 %v479, %v477
        %v530 = vpack.c.b16 %v480, %v478
        %v531 = vpack.c.b16 %v483, %v481
        %v532 = vpack.c.b16 %v484, %v482
        %v533 = vpack.c.b16 %v487, %v485
        %v534 = vpack.c.b16 %v488, %v486
        %v535 = vpack.c.b16 %v491, %v489
        %v536 = vpack.c.b16 %v492, %v490
        %v537 = vpack.c.b16 %v495, %v493
        %v538 = vpack.c.b16 %v496, %v494
        %v539 = vpack.c.b16 %v499, %v497
        %v540 = vpack.c.b16 %v500, %v498
        %v541 = vpack.c.b16 %v503, %v501
        %v542 = vpack.c.b16 %v504, %v502
        %v543 = vpack.c.b16 %v507, %v505
        %v544 = vpack.c.b16 %v508, %v506
        %v545 = vpack.c.b16 %v511, %v509
        %v546 = vpack.c.b16 %v512, %v510
        %v547 = vpack.c.b16 %v515, %v513
        %v548 = vpack.c.b16 %v516, %v514
        %581 = vmatprep.subr.bf16.mxu0 %v518
        %582 = vmatpush1.bf16.msra.mxu0 %v517
        %583 = vmatprep.subr.bf16.mxu0 %v520
        %584 = vmatpush1.bf16.msra.mxu0 %v519
        %585 = vmatprep.subr.bf16.mxu0 %v522
        %586 = vmatpush1.bf16.msra.mxu0 %v521
        %587 = vmatprep.subr.bf16.mxu0 %v524
        %588 = vmatpush1.bf16.msra.mxu0 %v523
        %589 = vmatprep.subr.bf16.mxu0 %v526
        %590 = vmatpush1.bf16.msra.mxu0 %v525
        %591 = vmatprep.subr.bf16.mxu0 %v528
        %592 = vmatpush1.bf16.msra.mxu0 %v527
        %593 = vmatprep.subr.bf16.mxu0 %v530
        %594 = vmatpush1.bf16.msra.mxu0 %v529
        %595 = vmatprep.subr.bf16.mxu0 %v532
        %596 = vmatpush1.bf16.msra.mxu0 %v531
        %597 = vmatprep.subr.bf16.mxu0 %v534
        %598 = vmatpush1.bf16.msra.mxu0 %v533
        %599 = vmatprep.subr.bf16.mxu0 %v536
        %600 = vmatpush1.bf16.msra.mxu0 %v535
        %601 = vmatprep.subr.bf16.mxu0 %v538
        %602 = vmatpush1.bf16.msra.mxu0 %v537
        %603 = vmatprep.subr.bf16.mxu0 %v540
        %604 = vmatpush1.bf16.msra.mxu0 %v539
        %605 = vmatprep.subr.bf16.mxu0 %v542
        %606 = vmatpush1.bf16.msra.mxu0 %v541
        %607 = vmatprep.subr.bf16.mxu0 %v544
        %608 = vmatpush1.bf16.msra.mxu0 %v543
        %609 = vmatprep.subr.bf16.mxu0 %v546
        %610 = vmatpush1.bf16.msra.mxu0 %v545
        %611 = vmatprep.subr.bf16.mxu0 %v548
        %612 = vmatpush1.bf16.msra.mxu0 %v547
        %613 = vmatprep.mubr.bf16.mxu0 %v376
        %614 = vmatmul.mubr.bf16.gmra.mrb[0].mxu0 %v375
        %v615 = vpop.f32.mrb[0].mxu0
        %v616 = vadd.f32 %v414, %v615
        %v617 = vpop.f32.mrb[0].mxu0
        %v618 = vadd.f32 %v418, %v617
        %v619 = vpop.f32.mrb[0].mxu0
        %v620 = vadd.f32 %v414, %v619
        %v621 = vpop.f32.mrb[0].mxu0
        %v622 = vadd.f32 %v418, %v621
        %623 = vdwg.mxu0
        %v624 = vpack.c.bf16 %v620, %v616
        %v625 = vpack.c.bf16 %v622, %v618
        %v628 = vunpack.c.l.b16 %v624
        %v629 = vunpack.c.l.b16 %v625
        %v630 = vunpack.c.h.b16 %v624
        %v631 = vunpack.c.h.b16 %v625
        %v632 = vpack.c.b16 %v629, %v628
        %v633 = vpack.c.b16 %v631, %v630
        %636 = vst [vmem:[%s294] sm:$0xff] %v632
        %637 = vst [vmem:[%s294 + $0x8] sm:$0xff] %v633
        %s638 = sand.u32 %s165, 1
        %s639 = scalar_lea.sflag [#allocation4], %s638
        %s640 = sand.u32 %s165, 1
        %s641 = smul.addr %s640, 16
        %s642 = scalar_lea.vmem [#allocation7], %s641
        // Predicated region
        $region49: #{tpu_custom_call.1} parent=39 // pred_check
          %p643 = pneg %p175
        $region50: #{tpu_custom_call.1} parent=39 // pred_check_branch
          %645 = sbr.rel (%p643) target = $region52
        $region51: #{tpu_custom_call.1} parent=39 // pred_region
          %s646 = smul.u32 2, %s27
          %s647 = smul.u32 2, %s28
          %s649 = ssub.s32 256, 256
          %650 = vsyncadd %s639, %s649
          %s651 = smul.addr %s646, 6
          %s652 = sadd.s32 %s647, %s651
          %s653 = smul.addr %s652, 64
          %s654 = scalar_lea.hbm %s5, %s653
          %s655 = sshll.u32 %s642, 4
          %s656 = int_to_ptr.vmem [resolvable:$true] %s655
          %661 = dma.vmem_to_hbm [thread:$0]  %s656, 256, %s654, %s639, 128, 384, 8
        $region52: #{tpu_custom_call.1} parent=39 // pred_fallthru
          _
      $region40: #{tpu_custom_call.1} parent=5 // pred_fallthru
        _
      %p662 = scmp.le.s32.totalorder 2, %s18
      // Predicated region
      $region53: #{tpu_custom_call.1} parent=5 // pred_check
        %p663 = pneg %p662
      $region54: #{tpu_custom_call.1} parent=5 // pred_check_branch
        %665 = sbr.rel (%p663) target = $region56
      $region55: #{tpu_custom_call.1} parent=5 // pred_region
        %s666 = ssub.s32 %s18, 2
        // Predicated region
        $region57: #{tpu_custom_call.1} parent=55 // pred_check
          %p667 = pneg %p181
        $region58: #{tpu_custom_call.1} parent=55 // pred_check_branch
          %669 = sbr.rel (%p667) target = $region60
        $region59: #{tpu_custom_call.1} parent=55 // pred_region
          %s670 = sand.u32 %s166, 1
          %s671 = scalar_lea.sflag [#allocation4], %s670
          %s672 = sand.u32 %s166, 1
          %s673 = smul.addr %s672, 16
          %s674 = scalar_lea.vmem [#allocation7], %s673
          %675 = dma.done %s671, 256
        $region60: #{tpu_custom_call.1} parent=55 // pred_fallthru
          _
      $region56: #{tpu_custom_call.1} parent=5 // pred_fallthru
        _
    $region6: #{tpu_custom_call.1} parent=1 // loop_footer
      %s22 = sadd.s32 1, %s18
    $region7: #{tpu_custom_call.1} parent=1 // loop_footer_branch
      %17 = sbr.rel target = $region3
    $region8: #{tpu_custom_call.1} parent=1 // loop_exit
      _
    %676 = vsyncpa [#allocation3], 1
    %s677 = scalar_lea.sflag [#allocation3], 1
    %678 = vsyncpa %s677, 1
    %679 = vsyncpa [#allocation6], 1
    %s680 = scalar_lea.sflag [#allocation6], 1
    %681 = vsyncpa %s680, 1
    %682 = vsyncpa [#allocation4], 1
    %s683 = scalar_lea.sflag [#allocation4], 1
    %684 = vsyncpa %s683, 1

</llo_original>
